<compile_context>
chip_gen: v7x
topology: tpu7x:2x2x1
jax: 0.10.0
libtpu: 0.0.40
codegen_flags: <defaults>
</compile_context>

<pallas_src>
import functools

import jax
import jax.numpy as jnp
from jax import lax
from jax.experimental import pallas as pl
from jax.experimental.pallas import tpu as pltpu

# Loss weights (from the PyTorch __init__ defaults).
ALPHA, BETA, GAMMA = 0.5, 0.3, 0.2            # ShapeBasedLoss
SHAPE_WEIGHT, MSE_WEIGHT = 0.5, 0.5           # CombinedLoss

_MiB = 1024 * 1024


def _round_up(x, m):
    return (x + m - 1) // m * m


def _sublane_multiple(dtype):
    # Native sublane packing: 8 rows for 4-byte, 16 for 2-byte, 32 for 1-byte.
    return max(8, 32 // jnp.dtype(dtype).itemsize)


def _hw_params():
    """(vmem_limit_bytes, per-tile f32 working budget) chosen for the local chip.

    v5e/v6e: 128 MiB VMEM per core -> 64 MiB scoped limit, ~3 MiB working tiles.
    v7x:      64 MiB per TensorCore -> 44 MiB scoped limit, ~2 MiB working tiles.
    """
    vmem_cap = 64 * _MiB                      # conservative default (v7x-safe)
    try:
        info = pltpu.get_tpu_info()
        vmem_cap = int(getattr(info, "vmem_capacity_bytes", vmem_cap))
    except Exception:
        pass
    if vmem_cap >= 100 * _MiB:
        return 64 * _MiB, 3 * _MiB
    return 44 * _MiB, 2 * _MiB


def _combined_loss_kernel(pred_ref, target_ref, out_ref, acc_ref, *,
                          n_rows, tile_rows, tiles_per_split, L, ragged,
                          use_roll, w_shape, w_grad, w_curv, w_mse):
    s = pl.program_id(0)          # core split            ("parallel")
    i = pl.program_id(1)          # row tile within split ("arbitrary")

    @pl.when(i == 0)
    def _init():
        acc_ref[...] = jnp.zeros_like(acc_ref)

    pred = pred_ref[...].astype(jnp.float32)
    tgt = target_ref[...].astype(jnp.float32)

    # Per-row min/max normalization along the sequence (lane) axis.
    p_min = jnp.min(pred, axis=-1, keepdims=True)
    p_max = jnp.max(pred, axis=-1, keepdims=True)
    t_min = jnp.min(tgt, axis=-1, keepdims=True)
    t_max = jnp.max(tgt, axis=-1, keepdims=True)

    # Reciprocal on the (rows, 1) column + broadcast multiply instead of a
    # full (rows, L) per-element divide.  approx=False keeps 1e-5 accuracy.
    p_norm = (pred - p_min) * pl.reciprocal(p_max - p_min, approx=False)
    t_norm = (tgt - t_min) * pl.reciprocal(t_max - t_min, approx=False)

    # Linearity: diff(p_norm) - diff(t_norm) == diff(p_norm - t_norm).
    d = p_norm - t_norm           # shape-loss error (normalized)
    e = pred - tgt                # raw error for the MSE term

    if ragged:
        # Rows past n_rows come from an out-of-bounds / re-read block whose
        # contents are undefined.  A select (not a multiply) zeroes them so
        # any NaN/Inf garbage cannot leak into the accumulator.
        row0 = (s * tiles_per_split + i) * tile_rows
        rows = lax.broadcasted_iota(jnp.int32, (tile_rows, 1), 0) + row0
        valid = rows < n_rows
        d = jnp.where(valid, d, 0.0)
        e = jnp.where(valid, e, 0.0)

    # Means (true element counts) and alpha/beta/gamma/shape/mse weights are
    # folded into per-term coefficients; every tile only does element-wise VPU
    # adds into the resident f32 accumulator (no per-tile XLU reduce, no
    # per-tile output store).
    if use_roll:
        # Lane-aligned rotate (L % 128 == 0): full-width diffs + lane masks.
        lane = lax.broadcasted_iota(jnp.int32, (tile_rows, L), 1)
        g = pltpu.roll(d, shift=L - 1, axis=1) - d    # g[j] = d[j+1]-d[j]
        c = pltpu.roll(g, shift=L - 1, axis=1) - g    # c[j] = g[j+1]-g[j]
        acc_ref[...] += (w_shape * d * d + w_mse * e * e
                         + jnp.where(lane < L - 1, w_grad * g * g, 0.0)
                         + jnp.where(lane < L - 2, w_curv * c * c, 0.0))
    else:
        # Narrow L: everything lives in one vreg per 8 rows; sliced diffs are
        # as cheap as a rotate and known to lower cleanly.
        g = d[:, 1:] - d[:, :-1]      # first-order difference, width L-1
        c = g[:, 1:] - g[:, :-1]      # second-order difference, width L-2
        acc_ref[...] += w_shape * d * d + w_mse * e * e
        acc_ref[:, : L - 1] += w_grad * g * g
        acc_ref[:, : L - 2] += w_curv * c * c

    @pl.when(i == tiles_per_split - 1)
    def _finalize():
        # One cross-lane reduce + one (masked) scalar store per split.
        out_ref[...] = jnp.sum(acc_ref[...], keepdims=True).reshape(out_ref.shape)


def combined_loss(pred, target, *, tile_budget_bytes=None):
    """pred, target: (B, C, L) arrays (any float dtype). Returns scalar f32."""
    assert pred.shape == target.shape and pred.ndim == 3
    B, C, L = pred.shape
    if L < 3:
        raise ValueError("L must be >= 3 for the second-order difference term.")
    R = B * C
    p2 = pred.reshape(R, L)        # keep native dtype in HBM; cast in-kernel
    t2 = target.reshape(R, L)

    vmem_limit, default_budget = _hw_params()
    budget = int(tile_budget_bytes) if tile_budget_bytes else default_budget

    # Tile sizing: `budget` bytes of f32 working set per tile.  Total VMEM is
    # roughly 2 inputs x 2 pipeline buffers + ~8-10 live f32 temporaries + the
    # f32 accumulator scratch ~= 13-15x the budget, well under `vmem_limit`.
    sub = _sublane_multiple(p2.dtype)
    row_bytes_f32 = L * 4
    max_tr = max(sub, (budget // row_bytes_f32) // sub * sub)
    tile_rows = min(max_tr, _round_up(R, sub))

    n_valid_tiles = -(-R // tile_rows)          # tiles containing >= 1 real row
    n_split = 2 if n_valid_tiles >= 2 else 1    # v7x megacore; no-op on 1 TC
    tiles_per_split = -(-n_valid_tiles // n_split)
    ragged = n_split * tiles_per_split * tile_rows > R
    last_block = n_valid_tiles - 1

    # Fold the means (true element counts) and loss weights into coefficients.
    w_shape = SHAPE_WEIGHT * ALPHA / (R * L)
    w_grad = SHAPE_WEIGHT * BETA / (R * (L - 1))
    w_curv = SHAPE_WEIGHT * GAMMA / (R * (L - 2))
    w_mse = MSE_WEIGHT / (R * L)

    use_roll = (L % 128 == 0)

    kernel = functools.partial(
        _combined_loss_kernel,
        n_rows=R, tile_rows=tile_rows, tiles_per_split=tiles_per_split,
        L=L, ragged=ragged, use_roll=use_roll,
        w_shape=w_shape, w_grad=w_grad, w_curv=w_curv, w_mse=w_mse)

    def in_map(s, i):
        # Clamp trailing fully-out-of-range tiles (possible when the tile count
        # is rounded up to the 2-way split) onto the last real block; their
        # contributions are masked to zero in-kernel, so no HBM padding copy is
        # ever needed.
        return (jnp.minimum(s * tiles_per_split + i, last_block), 0)

    out = pl.pallas_call(
        kernel,
        out_shape=jax.ShapeDtypeStruct((n_split, 1, 1), jnp.float32),
        grid_spec=pltpu.PrefetchScalarGridSpec(
            num_scalar_prefetch=0,
            grid=(n_split, tiles_per_split),
            in_specs=[
                pl.BlockSpec((tile_rows, L), in_map),
                pl.BlockSpec((tile_rows, L), in_map),
            ],
            out_specs=pl.BlockSpec((1, 1, 1), lambda s, i: (s, 0, 0)),
            scratch_shapes=[pltpu.VMEM((tile_rows, L), jnp.float32)],
        ),
        compiler_params=pltpu.CompilerParams(
            dimension_semantics=("parallel", "arbitrary"),
            vmem_limit_bytes=vmem_limit,
        ),
    )(p2, t2)
    return jnp.sum(out)


def combined_loss_ref(pred, target):
    """Pure-JAX reference matching the PyTorch module."""
    pred = pred.astype(jnp.float32)
    target = target.astype(jnp.float32)
    p_min = pred.min(axis=2, keepdims=True)
    p_max = pred.max(axis=2, keepdims=True)
    t_min = target.min(axis=2, keepdims=True)
    t_max = target.max(axis=2, keepdims=True)
    p_norm = (pred - p_min) / (p_max - p_min)
    t_norm = (target - t_min) / (t_max - t_min)
    shape_loss = jnp.mean((p_norm - t_norm) ** 2)
    p_grad = p_norm[:, :, 1:] - p_norm[:, :, :-1]
    t_grad = t_norm[:, :, 1:] - t_norm[:, :, :-1]
    gradient_loss = jnp.mean((p_grad - t_grad) ** 2)
    p_grad2 = p_grad[:, :, 1:] - p_grad[:, :, :-1]
    t_grad2 = t_grad[:, :, 1:] - t_grad[:, :, :-1]
    curvature_loss = jnp.mean((p_grad2 - t_grad2) ** 2)
    shape_total = ALPHA * shape_loss + BETA * gradient_loss + GAMMA * curvature_loss
    mse = jnp.mean((pred - target) ** 2)
    return SHAPE_WEIGHT * shape_total + MSE_WEIGHT * mse


if __name__ == "__main__":
    key = jax.random.PRNGKey(0)
    k1, k2, k3, k4, k5, k6 = jax.random.split(key, 6)

    # Primary small case matching the module's expected (B, C, L) inputs.
    B, C, L = 2, 4, 16
    pred = jax.random.normal(k1, (B, C, L), dtype=jnp.float32)
    target = jax.random.normal(k2, (B, C, L), dtype=jnp.float32)
    loss = jax.block_until_ready(combined_loss(pred, target))
    ref = combined_loss_ref(pred, target)
    assert jnp.allclose(loss, ref, rtol=1e-5, atol=1e-5), (loss, ref)

    # Multi-tile + 2-way split path (tiny forced tile budget); no ragged rows.
    p2 = jax.random.normal(k3, (8, 16, 16), dtype=jnp.float32)
    t2 = jax.random.normal(k4, (8, 16, 16), dtype=jnp.float32)
    loss2 = jax.block_until_ready(combined_loss(p2, t2, tile_budget_bytes=2048))
    ref2 = combined_loss_ref(p2, t2)
    assert jnp.allclose(loss2, ref2, rtol=1e-5, atol=1e-5), (loss2, ref2)

    # Ragged path: partial last block + a fully out-of-range clamped tile
    # (R=100, tile_rows=40 -> 3 real tiles rounded up to a 2x2 grid).
    p3 = jax.random.normal(k5, (4, 25, 16), dtype=jnp.float32)
    t3 = jax.random.normal(k6, (4, 25, 16), dtype=jnp.float32)
    loss3 = jax.block_until_ready(combined_loss(p3, t3, tile_budget_bytes=2560))
    ref3 = combined_loss_ref(p3, t3)
    assert jnp.allclose(loss3, ref3, rtol=1e-5, atol=1e-5), (loss3, ref3)

    print("KERNEL_OK")
</pallas_src>

<mosaic_0001>
module attributes {stable_mosaic.version = 11 : i64} {
  func.func @_combined_loss_kernel(%arg0: i32, %arg1: i32, %arg2: memref<8x16xf32, #tpu.memory_space<vmem>>, %arg3: memref<8x16xf32, #tpu.memory_space<vmem>>, %arg4: memref<1x1x1xf32, #tpu.memory_space<vmem>>, %arg5: memref<8x16xf32, #tpu.memory_space<vmem>>) attributes {dimension_semantics = [#tpu.dimension_semantics<parallel>, #tpu.dimension_semantics<arbitrary>], iteration_bounds = array<i64: 1, 1>, scalar_prefetch = 0 : i64, scratch_operands = 1 : i64, tpu.core_type = #tpu.core_type<tc>, window_params = [{transform_indices = @transform_0, window_bounds = array<i64: 8, 16>}, {transform_indices = @transform_1, window_bounds = array<i64: 8, 16>}, {transform_indices = @transform_2, window_bounds = array<i64: 1, 1, 1>}]} {
    %c0_i32 = arith.constant 0 : i32
    %0 = arith.cmpi eq, %arg1, %c0_i32 : i32
    %1 = arith.extui %0 : i1 to i32
    %c0_i32_0 = arith.constant 0 : i32
    %2 = arith.cmpi ne, %1, %c0_i32_0 : i32
    scf.if %2 {
      %cst_25 = arith.constant 0.000000e+00 : f32
      %58 = vector.broadcast %cst_25 : f32 to vector<8x16xf32>
      %c0_26 = arith.constant 0 : index
      %c0_27 = arith.constant 0 : index
      %59 = vector.load %arg5[%c0_26, %c0_27] : memref<8x16xf32, #tpu.memory_space<vmem>>, vector<8x16xf32>
      tpu.vector_store %arg5[%c0_26, %c0_27], %58 {strides = array<i32>} : memref<8x16xf32, #tpu.memory_space<vmem>>, vector<8x16xf32>,
    } else {
    }
    %c0 = arith.constant 0 : index
    %c0_1 = arith.constant 0 : index
    %3 = vector.load %arg2[%c0, %c0_1] : memref<8x16xf32, #tpu.memory_space<vmem>>, vector<8x16xf32>
    %c0_2 = arith.constant 0 : index
    %c0_3 = arith.constant 0 : index
    %4 = vector.load %arg3[%c0_2, %c0_3] : memref<8x16xf32, #tpu.memory_space<vmem>>, vector<8x16xf32>
    %cst = arith.constant dense<0x7F800000> : vector<8xf32>
    %5 = vector.multi_reduction <minimumf>, %3, %cst [1] : vector<8x16xf32> to vector<8xf32>
    %6 = vector.shape_cast %5 : vector<8xf32> to vector<8x1xf32>
    %cst_4 = arith.constant dense<0xFF800000> : vector<8xf32>
    %7 = vector.multi_reduction <maximumf>, %3, %cst_4 [1] : vector<8x16xf32> to vector<8xf32>
    %8 = vector.shape_cast %7 : vector<8xf32> to vector<8x1xf32>
    %cst_5 = arith.constant dense<0x7F800000> : vector<8xf32>
    %9 = vector.multi_reduction <minimumf>, %4, %cst_5 [1] : vector<8x16xf32> to vector<8xf32>
    %10 = vector.shape_cast %9 : vector<8xf32> to vector<8x1xf32>
    %cst_6 = arith.constant dense<0xFF800000> : vector<8xf32>
    %11 = vector.multi_reduction <maximumf>, %4, %cst_6 [1] : vector<8x16xf32> to vector<8xf32>
    %12 = vector.shape_cast %11 : vector<8xf32> to vector<8x1xf32>
    %13 = vector.broadcast %6 : vector<8x1xf32> to vector<8x16xf32>
    %14 = arith.subf %3, %13 : vector<8x16xf32>
    %15 = arith.subf %8, %6 : vector<8x1xf32>
    %16 = tpu.reciprocal %15 : vector<8x1xf32> -> vector<8x1xf32>
    %17 = vector.broadcast %16 : vector<8x1xf32> to vector<8x16xf32>
    %18 = arith.mulf %14, %17 : vector<8x16xf32>
    %19 = vector.broadcast %10 : vector<8x1xf32> to vector<8x16xf32>
    %20 = arith.subf %4, %19 : vector<8x16xf32>
    %21 = arith.subf %12, %10 : vector<8x1xf32>
    %22 = tpu.reciprocal %21 : vector<8x1xf32> -> vector<8x1xf32>
    %23 = vector.broadcast %22 : vector<8x1xf32> to vector<8x16xf32>
    %24 = arith.mulf %20, %23 : vector<8x16xf32>
    %25 = arith.subf %18, %24 : vector<8x16xf32>
    %26 = arith.subf %3, %4 : vector<8x16xf32>
    %27 = vector.extract_strided_slice %25 {offsets = [0, 1], sizes = [8, 15], strides = [1, 1]} : vector<8x16xf32> to vector<8x15xf32>
    %28 = vector.extract_strided_slice %25 {offsets = [0, 0], sizes = [8, 15], strides = [1, 1]} : vector<8x16xf32> to vector<8x15xf32>
    %29 = arith.subf %27, %28 : vector<8x15xf32>
    %30 = vector.extract_strided_slice %29 {offsets = [0, 1], sizes = [8, 14], strides = [1, 1]} : vector<8x15xf32> to vector<8x14xf32>
    %31 = vector.extract_strided_slice %29 {offsets = [0, 0], sizes = [8, 14], strides = [1, 1]} : vector<8x15xf32> to vector<8x14xf32>
    %32 = arith.subf %30, %31 : vector<8x14xf32>
    %c0_7 = arith.constant 0 : index
    %c0_8 = arith.constant 0 : index
    %33 = vector.load %arg5[%c0_7, %c0_8] : memref<8x16xf32, #tpu.memory_space<vmem>>, vector<8x16xf32>
    %cst_9 = arith.constant 0.001953125 : f32
    %34 = vector.broadcast %cst_9 : f32 to vector<8x16xf32>
    %35 = arith.mulf %34, %25 : vector<8x16xf32>
    %36 = arith.mulf %35, %25 : vector<8x16xf32>
    %cst_10 = arith.constant 3.906250e-03 : f32
    %37 = vector.broadcast %cst_10 : f32 to vector<8x16xf32>
    %38 = arith.mulf %37, %26 : vector<8x16xf32>
    %39 = arith.mulf %38, %26 : vector<8x16xf32>
    %40 = arith.addf %36, %39 : vector<8x16xf32>
    %41 = arith.addf %33, %40 : vector<8x16xf32>
    %c0_11 = arith.constant 0 : index
    %c0_12 = arith.constant 0 : index
    %42 = vector.load %arg5[%c0_11, %c0_12] : memref<8x16xf32, #tpu.memory_space<vmem>>, vector<8x16xf32>
    tpu.vector_store %arg5[%c0_11, %c0_12], %41 {strides = array<i32>} : memref<8x16xf32, #tpu.memory_space<vmem>>, vector<8x16xf32>,
    %c0_13 = arith.constant 0 : index
    %c0_14 = arith.constant 0 : index
    %43 = vector.load %arg5[%c0_13, %c0_14] : memref<8x16xf32, #tpu.memory_space<vmem>>, vector<8x15xf32>
    %cst_15 = arith.constant 1.250000e-03 : f32
    %44 = vector.broadcast %cst_15 : f32 to vector<8x15xf32>
    %45 = arith.mulf %44, %29 : vector<8x15xf32>
    %46 = arith.mulf %45, %29 : vector<8x15xf32>
    %47 = arith.addf %43, %46 : vector<8x15xf32>
    %c0_16 = arith.constant 0 : index
    %c0_17 = arith.constant 0 : index
    %48 = vector.load %arg5[%c0_16, %c0_17] : memref<8x16xf32, #tpu.memory_space<vmem>>, vector<8x15xf32>
    tpu.vector_store %arg5[%c0_16, %c0_17], %47 {strides = array<i32>} : memref<8x16xf32, #tpu.memory_space<vmem>>, vector<8x15xf32>,
    %c0_18 = arith.constant 0 : index
    %c0_19 = arith.constant 0 : index
    %49 = vector.load %arg5[%c0_18, %c0_19] : memref<8x16xf32, #tpu.memory_space<vmem>>, vector<8x14xf32>
    %cst_20 = arith.constant 8.92857148E-4 : f32
    %50 = vector.broadcast %cst_20 : f32 to vector<8x14xf32>
    %51 = arith.mulf %50, %32 : vector<8x14xf32>
    %52 = arith.mulf %51, %32 : vector<8x14xf32>
    %53 = arith.addf %49, %52 : vector<8x14xf32>
    %c0_21 = arith.constant 0 : index
    %c0_22 = arith.constant 0 : index
    %54 = vector.load %arg5[%c0_21, %c0_22] : memref<8x16xf32, #tpu.memory_space<vmem>>, vector<8x14xf32>
    tpu.vector_store %arg5[%c0_21, %c0_22], %53 {strides = array<i32>} : memref<8x16xf32, #tpu.memory_space<vmem>>, vector<8x14xf32>,
    %c0_i32_23 = arith.constant 0 : i32
    %55 = arith.cmpi eq, %arg1, %c0_i32_23 : i32
    %56 = arith.extui %55 : i1 to i32
    %c0_i32_24 = arith.constant 0 : i32
    %57 = arith.cmpi ne, %56, %c0_i32_24 : i32
    scf.if %57 {
      %c0_25 = arith.constant 0 : index
      %c0_26 = arith.constant 0 : index
      %58 = vector.load %arg5[%c0_25, %c0_26] : memref<8x16xf32, #tpu.memory_space<vmem>>, vector<8x16xf32>
      %59 = vector.shape_cast %58 : vector<8x16xf32> to vector<1x8x16xf32>
      %cst_27 = arith.constant dense<0.000000e+00> : vector<1xf32>
      %60 = vector.multi_reduction <add>, %59, %cst_27 [1, 2] : vector<1x8x16xf32> to vector<1xf32>
      %61 = vector.shape_cast %60 : vector<1xf32> to vector<1x1x1xf32>
      %62 = vector.extract %61[0, 0, 0] : f32 from vector<1x1x1xf32>
      %63 = vector.broadcast %62 : f32 to vector<1x1xf32>
      %64 = vector.shape_cast %63 : vector<1x1xf32> to vector<1x1x1xf32>
      %c0_28 = arith.constant 0 : index
      %c0_29 = arith.constant 0 : index
      %c0_30 = arith.constant 0 : index
      %65 = vector.load %arg4[%c0_28, %c0_29, %c0_30] : memref<1x1x1xf32, #tpu.memory_space<vmem>>, vector<1x1x1xf32>
      tpu.vector_store %arg4[%c0_28, %c0_29, %c0_30], %64 {strides = array<i32>} : memref<1x1x1xf32, #tpu.memory_space<vmem>>, vector<1x1x1xf32>,
    } else {
    }
    return
  }
  func.func @transform_0(%arg0: i32, %arg1: i32) -> (i32, i32) {
    %c1_i32 = arith.constant 1 : i32
    %0 = arith.muli %arg0, %c1_i32 : i32
    %1 = arith.addi %0, %arg1 : i32
    %c0_i32 = arith.constant 0 : i32
    %2 = arith.minsi %1, %c0_i32 : i32
    %c0_i32_0 = arith.constant 0 : i32
    %c0_i32_1 = arith.constant 0 : i32
    return %2, %c0_i32_0 : i32, i32
  }
  func.func @transform_1(%arg0: i32, %arg1: i32) -> (i32, i32) {
    %c1_i32 = arith.constant 1 : i32
    %0 = arith.muli %arg0, %c1_i32 : i32
    %1 = arith.addi %0, %arg1 : i32
    %c0_i32 = arith.constant 0 : i32
    %2 = arith.minsi %1, %c0_i32 : i32
    %c0_i32_0 = arith.constant 0 : i32
    %c0_i32_1 = arith.constant 0 : i32
    return %2, %c0_i32_0 : i32, i32
  }
  func.func @transform_2(%arg0: i32, %arg1: i32) -> (i32, i32, i32) {
    %c0_i32 = arith.constant 0 : i32
    %c0_i32_0 = arith.constant 0 : i32
    %c0_i32_1 = arith.constant 0 : i32
    return %arg0, %c0_i32, %c0_i32_0 : i32, i32, i32
  }
}

</mosaic_0001>

<llo_original>
// kernel: tpu_custom_call.1
$region0: #{tpu_custom_call.1}
  #allocation0 [shape = 'u32[]', space=smem, size = 0x4, offset = 0x4, fixed_abs, tag = 'smem constant byte address 0x4 - core index']
  #allocation1 [shape = 'u32[144,128]{1,0:T(1,128)}', space=vmem, size = 0x12000, scoped, tag = 'internal scratch']
  #allocation2 [shape = 'f32[8,16]{1,0:T(8,128)}', space=vmem, size = 0x1000, scoped, tag = 'scratch operand']
  %s0 = inlined_call_operand.hbm [shape: f32[8,16], index: 0, kind: input, shape index: {}]
  %s1 = inlined_call_operand.hbm [shape: f32[8,16], index: 1, kind: input, shape index: {}]
  %s2 = inlined_call_operand.hbm [shape: f32[1,1,1], index: 2, kind: output, shape index: {}]
  %s3 = sld [smem:[#allocation0]]
  $region34: #{tpu_custom_call.1} parent=0
    _
  %s5 = ssub.s32 1, %s3
  %s6 = scalar_select 0, %s5, %s3
  $region1: #{tpu_custom_call.1} parent=0
    #allocation3 [shape = 'u8[4096]{0}', space=vmem, size = 0x1000, scoped, tag = 'input window, operand 0, single buffered']
    #allocation4 [shape = 's32[1]{0}', space=sflag, size = 0x4, scoped, tag = 'scoped memory for tpu_custom_call.1']
    #allocation5 [shape = 's32[1]{0}', space=sflag, size = 0x4, scoped, tag = 'scoped memory for tpu_custom_call.1']
    #allocation6 [shape = 'u8[4096]{0}', space=vmem, size = 0x1000, scoped, tag = 'input window, operand 1, single buffered']
    #allocation7 [shape = 's32[1]{0}', space=sflag, size = 0x4, scoped, tag = 'scoped memory for tpu_custom_call.1']
    #allocation8 [shape = 'u8[512]{0}', space=vmem, size = 0x400, scoped, tag = 'output window, operand 0, single buffered']
    %7 = vsyncpa [#allocation4], 0
    %8 = vsyncpa [#allocation7], 0
    %9 = vsyncpa [#allocation5], 0
    // Predicated region
    $region2: #{tpu_custom_call.1} parent=1 // pred_check
      _
    $region3: #{tpu_custom_call.1} parent=1 // pred_check_branch
      %11 = sbr.rel (0) target = $region5
    $region4: #{tpu_custom_call.1} parent=1 // pred_region
      %s12 = sadd.s32 0, 0
      %p13 = scmp.lt.s32.totalorder %s12, 0
      %s14 = scalar_select %p13, %s12, 0
      %s16 = ssub.s32 128, 128
      %17 = vsyncadd [#allocation4], %s16
      %s18 = smul.addr %s14, 128
      %s19 = scalar_lea.hbm %s0, %s18
      %s21 = sshll.u32 [#allocation3], 4
      %s22 = int_to_ptr.vmem [resolvable:$true] %s21
      %24 = dma.hbm_to_vmem [thread:$0]  %s19, 128, %s22, [#allocation4]
    $region5: #{tpu_custom_call.1} parent=1 // pred_fallthru
      _
    // Predicated region
    $region6: #{tpu_custom_call.1} parent=1 // pred_check
      _
    $region7: #{tpu_custom_call.1} parent=1 // pred_check_branch
      %26 = sbr.rel (0) target = $region9
    $region8: #{tpu_custom_call.1} parent=1 // pred_region
      %s27 = sadd.s32 0, 0
      %p28 = scmp.lt.s32.totalorder %s27, 0
      %s29 = scalar_select %p28, %s27, 0
      %s31 = ssub.s32 128, 128
      %32 = vsyncadd [#allocation7], %s31
      %s33 = smul.addr %s29, 128
      %s34 = scalar_lea.hbm %s1, %s33
      %s36 = sshll.u32 [#allocation6], 4
      %s37 = int_to_ptr.vmem [resolvable:$true] %s36
      %39 = dma.hbm_to_vmem [thread:$0]  %s34, 128, %s37, [#allocation7]
    $region9: #{tpu_custom_call.1} parent=1 // pred_fallthru
      _
    // Predicated region
    $region10: #{tpu_custom_call.1} parent=1 // pred_check
      _
    $region11: #{tpu_custom_call.1} parent=1 // pred_check_branch
      %41 = sbr.rel (0) target = $region13
    $region12: #{tpu_custom_call.1} parent=1 // pred_region
      %42 = dma.done [#allocation4], 128
    $region13: #{tpu_custom_call.1} parent=1 // pred_fallthru
      _
    // Predicated region
    $region14: #{tpu_custom_call.1} parent=1 // pred_check
      _
    $region15: #{tpu_custom_call.1} parent=1 // pred_check_branch
      %44 = sbr.rel (0) target = $region17
    $region16: #{tpu_custom_call.1} parent=1 // pred_region
      %45 = dma.done [#allocation7], 128
    $region17: #{tpu_custom_call.1} parent=1 // pred_fallthru
      _
    %s46 = sadd.s32 0, 0
    %p47 = scmp.lt.s32.totalorder %s46, 0
    %s48 = scalar_select %p47, %s46, 0
    %s49 = sadd.s32 0, 0
    %p50 = scmp.lt.s32.totalorder %s49, 0
    %s51 = scalar_select %p50, %s49, 0
    %p52 = scmp.eq.s32.totalorder 0, 0
    // Predicated region
    $region18: #{tpu_custom_call.1} parent=1 // pred_check
      %p53 = pneg %p52
    $region19: #{tpu_custom_call.1} parent=1 // pred_check_branch
      %55 = sbr.rel (%p53) target = $region21
    $region20: #{tpu_custom_call.1} parent=1 // pred_region
      %vm56 = vcmask 130048
      %57 = vst.msk [vmem:[#allocation2] sm:$0xff] %vm56, 0.0
    $region21: #{tpu_custom_call.1} parent=1 // pred_fallthru
      _
    %v58 = vld [vmem:[#allocation3] sm:$0xff]
    %v59 = vld [vmem:[#allocation6] sm:$0xff]
    %vm60 = vcmask 130048
    %v61 = vsel %vm60, %v58, inf
    %62 = vmin.xlane.f32.xlu0 %v61
    %v63 = vpop.xlane.xlu0 %62
    %v64 = vsel %vm60, %v58, -inf
    %65 = vmax.xlane.f32.xlu0 %v64
    %v66 = vpop.xlane.xlu0 %65
    %v67 = vsel %vm60, %v59, inf
    %68 = vmin.xlane.f32.xlu0 %v67
    %v69 = vpop.xlane.xlu0 %68
    %v70 = vsel %vm60, %v59, -inf
    %71 = vmax.xlane.f32.xlu0 %v70
    %v72 = vpop.xlane.xlu0 %71
    %v73 = vsub.f32 %v58, %v63
    %v74 = vsub.f32 %v66, %v63
    %v75 = vrcp.pop %v74
    %v76 = vmul.f32 %v73, %v75
    %v77 = vsub.f32 %v59, %v69
    %v78 = vsub.f32 %v72, %v69
    %v79 = vrcp.pop %v78
    %v80 = vmul.f32 %v77, %v79
    %v81 = vsub.f32 %v76, %v80
    %v82 = vsub.f32 %v58, %v59
    %84 = vrot.lane.b32.xlu0 %v81, 1
    %v85 = vpop.permute.xlu0 %84
    %v87 = vsub.f32 %v81, %v85
    %89 = vrot.lane.b32.xlu0 %v87, 1
    %v90 = vpop.permute.xlu0 %89
    %v92 = vsub.f32 %v87, %v90
    %v93 = vld [vmem:[#allocation2] sm:$0xff]
    %v94 = vmul.f32 %v81, 0.001953125
    %v95 = vmul.f32 %v94, %v81
    %v96 = vmul.f32 %v82, 0.00390625
    %v97 = vmul.f32 %v96, %v82
    %v98 = vadd.f32 %v95, %v97
    %v99 = vadd.f32 %v93, %v98
    %100 = vst.msk [vmem:[#allocation2] sm:$0xff] %vm60, %v99
    %v101 = vld [vmem:[#allocation2] sm:$0xff]
    %v102 = vmul.f32 %v87, 0.00125
    %v103 = vmul.f32 %v102, %v87
    %105 = vrot.lane.b32.xlu0 %v103, 127
    %v106 = vpop.permute.xlu0 %105
    %v108 = vadd.f32 %v101, %v106
    %vm109 = vcmask 121856
    %110 = vst.msk [vmem:[#allocation2] sm:$0xff] %vm109, %v108
    %v111 = vld [vmem:[#allocation2] sm:$0xff]
    %v112 = vmul.f32 %v92, 0.00089285715
    %v113 = vmul.f32 %v112, %v92
    %115 = vrot.lane.b32.xlu0 %v113, 126
    %v116 = vpop.permute.xlu0 %115
    %v118 = vadd.f32 %v111, %v116
    %vm119 = vcmask 113664
    %120 = vst.msk [vmem:[#allocation2] sm:$0xff] %vm119, %v118
    // Predicated region
    $region22: #{tpu_custom_call.1} parent=1 // pred_check
      %p121 = pneg %p52
    $region23: #{tpu_custom_call.1} parent=1 // pred_check_branch
      %123 = sbr.rel (%p121) target = $region25
    $region24: #{tpu_custom_call.1} parent=1 // pred_region
      %v124 = vld [vmem:[#allocation2] sm:$0xff]
      %v125 = vsel %vm60, %v124, 0.0
      %126 = vadd.xlane.f32.xlu0 %v125
      %v127 = vpop.xlane.xlu0 %126
      %v128 = vrot.slane %v127, 4
      %v129 = vadd.f32 %v127, %v128
      %v130 = vrot.slane %v129, 2
      %v131 = vadd.f32 %v129, %v130
      %v132 = vrot.slane %v131, 1
      %v133 = vadd.f32 %v131, %v132
      %s134 = vtos %v133
      %v135 = vstv %s134
      %vm136 = vcmask 0
      %137 = vst.msk [vmem:[#allocation8] sm:$0x1] %vm136, %v135
    $region25: #{tpu_custom_call.1} parent=1 // pred_fallthru
      _
    // Predicated region
    $region26: #{tpu_custom_call.1} parent=1 // pred_check
      _
    $region27: #{tpu_custom_call.1} parent=1 // pred_check_branch
      %139 = sbr.rel (0) target = $region29
    $region28: #{tpu_custom_call.1} parent=1 // pred_region
      %s141 = ssub.s32 16, 16
      %142 = vsyncadd [#allocation5], %s141
      %s144 = sshll.u32 [#allocation8], 4
      %s145 = int_to_ptr.vmem [resolvable:$true] %s144
      %147 = dma.vmem_to_hbm [thread:$0]  %s145, 16, %s2, [#allocation5]
    $region29: #{tpu_custom_call.1} parent=1 // pred_fallthru
      _
    // Predicated region
    $region30: #{tpu_custom_call.1} parent=1 // pred_check
      _
    $region31: #{tpu_custom_call.1} parent=1 // pred_check_branch
      %149 = sbr.rel (0) target = $region33
    $region32: #{tpu_custom_call.1} parent=1 // pred_region
      %150 = dma.done [#allocation5], 16
    $region33: #{tpu_custom_call.1} parent=1 // pred_fallthru
      _
    %151 = vsyncpa [#allocation4], 1
    %152 = vsyncpa [#allocation7], 1
    %153 = vsyncpa [#allocation5], 1

</llo_original>
